<compile_context>
chip_gen: v5e
topology: v5e:2x2
jax: 0.10.0
libtpu: 0.0.40
codegen_flags: <defaults>
</compile_context>

<pallas_src>
import math

import jax
import jax.numpy as jnp
from jax.experimental import pallas as pl
from jax.experimental.pallas import tpu as pltpu


_LANES = 128
_TARGET_BLOCK_BYTES = 4 << 20   # ~4 MiB x-block: amortizes per-step grid overhead
_VMEM_LIMIT_BYTES = 32 << 20    # explicit: above v5e's 16 MiB scoped default, fits v7x


# ---------------------------------------------------------------------------
# Kernel body: keep it a single add (mem-bound; extra VPU work is pointless).
# Works for both paths:
#   row-tiled   : x_ref (1,  TR, 128), pe_ref (TR,  128)
#   batch-folded: x_ref (TB, rows,128), pe_ref (rows,128)
# pe broadcasts over the leading (batch) dim.
# ---------------------------------------------------------------------------
def _pe_add_kernel(x_ref, pe_ref, o_ref):
    o_ref[...] = (x_ref[...] + pe_ref[...]).astype(o_ref.dtype)


# ---------------------------------------------------------------------------
# Buffer construction (replicates PositionalEncoding.__init__).
# Built in f32 for accuracy, stored in the activation dtype so the forward
# path never emits a per-call convert.
# ---------------------------------------------------------------------------
def make_positional_encoding(d_model: int, max_seq_length: int,
                             dtype=jnp.float32) -> jnp.ndarray:
    position = jnp.arange(max_seq_length, dtype=jnp.float32)[:, None]          # (L, 1)
    div_term = jnp.exp(
        jnp.arange(0, d_model, 2, dtype=jnp.float32)
        * -(math.log(10000.0) / d_model)
    )                                                                           # (D/2,)
    angles = position * div_term                                                # (L, D/2)
    pe = jnp.zeros((max_seq_length, d_model), dtype=jnp.float32)
    pe = pe.at[:, 0::2].set(jnp.sin(angles))
    pe = pe.at[:, 1::2].set(jnp.cos(angles))
    return pe.astype(dtype)                                                     # (L, D)


def _row_tile(rows: int, lanes: int, itemsize: int, sub: int,
              target_bytes: int) -> int:
    """Largest row-tile near target_bytes; multiple of `sub` or the full extent."""
    target_rows = max(sub, target_bytes // max(1, lanes * itemsize))
    if rows <= target_rows:
        return rows                           # full second-minor extent: always legal
    return max(sub, (target_rows // sub) * sub)


# ---------------------------------------------------------------------------
# Core lane-dense add: out[b] = x_v[b] + pe_v, x_v (B, rows, 128), pe_v (rows, 128).
# ---------------------------------------------------------------------------
def _lane_dense_add(x_v: jnp.ndarray, pe_v: jnp.ndarray) -> jnp.ndarray:
    B, rows, lanes = x_v.shape
    itemsize = jnp.dtype(x_v.dtype).itemsize
    sub = max(8, 32 // itemsize)              # native sublane packing (f32:8 bf16:16 i8:32)
    per_batch_bytes = rows * lanes * itemsize

    if per_batch_bytes >= _TARGET_BLOCK_BYTES:
        # Big per-batch slab: tile rows within each batch element.
        tile_r = _row_tile(rows, lanes, itemsize, sub, _TARGET_BLOCK_BYTES)
        grid = (pl.cdiv(rows, tile_r), B)     # row tiles OUTER -> pe DMA skipped over batch
        return pl.pallas_call(
            _pe_add_kernel,
            out_shape=jax.ShapeDtypeStruct((B, rows, lanes), x_v.dtype),
            grid_spec=pltpu.PrefetchScalarGridSpec(
                num_scalar_prefetch=0,
                grid=grid,
                in_specs=[
                    pl.BlockSpec((1, tile_r, lanes), lambda r, b: (b, r, 0)),   # x
                    pl.BlockSpec((tile_r, lanes), lambda r, b: (r, 0)),         # pe
                ],
                out_specs=pl.BlockSpec((1, tile_r, lanes), lambda r, b: (b, r, 0)),
            ),
            compiler_params=pltpu.CompilerParams(
                dimension_semantics=("parallel", "parallel"),
                vmem_limit_bytes=_VMEM_LIMIT_BYTES,
            ),
        )(x_v, pe_v)

    # Small per-batch slab: fold batch elements into each block so blocks stay
    # near the multi-MiB knee; pe is one full-extent, VMEM-resident block.
    tb = min(B, max(1, _TARGET_BLOCK_BYTES // per_batch_bytes))
    grid = (pl.cdiv(B, tb),)
    # NOTE(synk): input_output_aliases={0: 0} could donate x here when the
    # caller no longer needs it (peak-HBM win only); left off to keep x live.
    return pl.pallas_call(
        _pe_add_kernel,
        out_shape=jax.ShapeDtypeStruct((B, rows, lanes), x_v.dtype),
        grid_spec=pltpu.PrefetchScalarGridSpec(
            num_scalar_prefetch=0,
            grid=grid,
            in_specs=[
                pl.BlockSpec((tb, rows, lanes), lambda b: (b, 0, 0)),   # x
                pl.BlockSpec((rows, lanes), lambda b: (0, 0)),          # pe (resident)
            ],
            out_specs=pl.BlockSpec((tb, rows, lanes), lambda b: (b, 0, 0)),
        ),
        compiler_params=pltpu.CompilerParams(
            dimension_semantics=("parallel",),
            vmem_limit_bytes=_VMEM_LIMIT_BYTES,
        ),
    )(x_v, pe_v)


# ---------------------------------------------------------------------------
# Forward: out = x + pe[:S]  (broadcast over batch).
# ---------------------------------------------------------------------------
def positional_encoding_forward(x: jnp.ndarray, pe: jnp.ndarray) -> jnp.ndarray:
    B, S, D = x.shape
    if pe.dtype != x.dtype:
        # Prefer building pe in x.dtype at init (make_positional_encoding(..., dtype=))
        # so this per-call convert never runs.
        pe = pe.astype(x.dtype)
    pe_sliced = pe[:S, :]                      # forward()'s [:, :x.size(1)]
    n = S * D

    if n % _LANES == 0:
        rows = n // _LANES
        out = _lane_dense_add(x.reshape(B, rows, _LANES),
                              pe_sliced.reshape(rows, _LANES))
        return out.reshape(B, S, D)

    # Ragged fallback (S*D not a multiple of 128): pad the flattened per-batch
    # axis (<128 elems of pad) so stores stay lane-dense, then slice back.
    rows = pl.cdiv(n, _LANES)
    pad = rows * _LANES - n
    x_flat = jnp.pad(x.reshape(B, n), ((0, 0), (0, pad)))
    pe_flat = jnp.pad(pe_sliced.reshape(n), ((0, pad),))
    out = _lane_dense_add(x_flat.reshape(B, rows, _LANES),
                          pe_flat.reshape(rows, _LANES))
    return out.reshape(B, rows * _LANES)[:, :n].reshape(B, S, D)


if __name__ == "__main__":
    # Small shapes consistent with the module: batch=2, seq=8, d_model=32.
    batch, seq_len, d_model = 2, 8, 32
    max_seq_length = 16

    key = jax.random.PRNGKey(0)
    x = jax.random.normal(key, (batch, seq_len, d_model), dtype=jnp.float32)

    # pe built once at "init" time, already in the activation dtype.
    pe = make_positional_encoding(d_model, max_seq_length, dtype=x.dtype)

    fwd = jax.jit(positional_encoding_forward)
    out = jax.block_until_ready(fwd(x, pe))

    # Pure-JAX reference check.
    ref = x + pe[None, :seq_len, :]
    assert out.shape == (batch, seq_len, d_model)
    assert jnp.allclose(out, ref, atol=1e-6, rtol=1e-6)

    print("KERNEL_OK")
</pallas_src>

<mosaic_0001>
module attributes {stable_mosaic.version = 11 : i64} {
  func.func @_pe_add_kernel(%arg0: i32, %arg1: memref<2x2x128xf32, #tpu.memory_space<vmem>>, %arg2: memref<2x128xf32, #tpu.memory_space<vmem>>, %arg3: memref<2x2x128xf32, #tpu.memory_space<vmem>>) attributes {dimension_semantics = [#tpu.dimension_semantics<parallel>], iteration_bounds = array<i64: 1>, scalar_prefetch = 0 : i64, scratch_operands = 0 : i64, tpu.core_type = #tpu.core_type<tc>, window_params = [{transform_indices = @transform_0, window_bounds = array<i64: 2, 2, 128>}, {pipeline_mode = #tpu.pipeline_mode<synchronous>, transform_indices = @transform_1, window_bounds = array<i64: 2, 128>}, {transform_indices = @transform_2, window_bounds = array<i64: 2, 2, 128>}]} {
    %c0 = arith.constant 0 : index
    %c0_0 = arith.constant 0 : index
    %c0_1 = arith.constant 0 : index
    %0 = vector.load %arg1[%c0, %c0_0, %c0_1] : memref<2x2x128xf32, #tpu.memory_space<vmem>>, vector<2x2x128xf32>
    %c0_2 = arith.constant 0 : index
    %c0_3 = arith.constant 0 : index
    %1 = vector.load %arg2[%c0_2, %c0_3] : memref<2x128xf32, #tpu.memory_space<vmem>>, vector<2x128xf32>
    %2 = vector.shape_cast %1 : vector<2x128xf32> to vector<1x2x128xf32>
    %3 = vector.broadcast %2 : vector<1x2x128xf32> to vector<2x2x128xf32>
    %4 = arith.addf %0, %3 : vector<2x2x128xf32>
    %c0_4 = arith.constant 0 : index
    %c0_5 = arith.constant 0 : index
    %c0_6 = arith.constant 0 : index
    %5 = vector.load %arg3[%c0_4, %c0_5, %c0_6] : memref<2x2x128xf32, #tpu.memory_space<vmem>>, vector<2x2x128xf32>
    tpu.vector_store %arg3[%c0_4, %c0_5, %c0_6], %4 {strides = array<i32>} : memref<2x2x128xf32, #tpu.memory_space<vmem>>, vector<2x2x128xf32>,
    return
  }
  func.func @transform_0(%arg0: i32) -> (i32, i32, i32) {
    %c0_i32 = arith.constant 0 : i32
    %c0_i32_0 = arith.constant 0 : i32
    %c0_i32_1 = arith.constant 0 : i32
    return %arg0, %c0_i32, %c0_i32_0 : i32, i32, i32
  }
  func.func @transform_1(%arg0: i32) -> (i32, i32) {
    %c0_i32 = arith.constant 0 : i32
    %c0_i32_0 = arith.constant 0 : i32
    %c0_i32_1 = arith.constant 0 : i32
    return %c0_i32, %c0_i32_0 : i32, i32
  }
  func.func @transform_2(%arg0: i32) -> (i32, i32, i32) {
    %c0_i32 = arith.constant 0 : i32
    %c0_i32_0 = arith.constant 0 : i32
    %c0_i32_1 = arith.constant 0 : i32
    return %arg0, %c0_i32, %c0_i32_0 : i32, i32, i32
  }
}

</mosaic_0001>

<llo_original>
// kernel: positional_encoding_forward.1
$region0: #{positional_encoding_forward.1}
  #allocation0 [shape = 'u32[]', space=smem, size = 0x4, offset = 0x4, fixed_abs, tag = 'smem constant byte address 0x4 - core index']
  #allocation1 [shape = 'u32[72,128]{1,0:T(1,128)}', space=vmem, size = 0x9000, scoped, tag = 'internal scratch']
  %s0 = inlined_call_operand.vmem [shape: f32[2,2,128], index: 0, kind: input, shape index: {}]
  %s1 = inlined_call_operand.vmem [shape: f32[2,128], index: 1, kind: input, shape index: {}]
  %s2 = inlined_call_operand.vmem [shape: f32[2,2,128], index: 2, kind: output, shape index: {}]
  %s3 = sld [smem:[#allocation0]]
  $region18: #{positional_encoding_forward.1} parent=0
    _
  %s5 = ssub.s32 1, %s3
  %s6 = scalar_select 0, %s5, %s3
  // Predicated region
  $region2: #{positional_encoding_forward.1} parent=0 // pred_check
    _
  $region3: #{positional_encoding_forward.1} parent=0 // pred_check_branch
    %8 = sbr.rel (0) target = $region5
  $region4: #{positional_encoding_forward.1} parent=0 // pred_region
    _
  $region5: #{positional_encoding_forward.1} parent=0 // pred_fallthru
    _
  // Predicated region
  $region6: #{positional_encoding_forward.1} parent=0 // pred_check
    _
  $region7: #{positional_encoding_forward.1} parent=0 // pred_check_branch
    %10 = sbr.rel (0) target = $region9
  $region8: #{positional_encoding_forward.1} parent=0 // pred_region
    _
  $region9: #{positional_encoding_forward.1} parent=0 // pred_fallthru
    _
  %v11 = vld [vmem:[%s0] sm:$0x3]
  %v12 = vld [vmem:[%s0 + $0x2] sm:$0x3]
  %v13 = vld [vmem:[%s1] sm:$0x3]
  %v14 = vadd.f32 %v11, %v13
  %v15 = vadd.f32 %v12, %v13
  %16 = vst [vmem:[%s2] sm:$0x3] %v14
  %17 = vst [vmem:[%s2 + $0x2] sm:$0x3] %v15
  // Predicated region
  $region10: #{positional_encoding_forward.1} parent=0 // pred_check
    _
  $region11: #{positional_encoding_forward.1} parent=0 // pred_check_branch
    %19 = sbr.rel (0) target = $region13
  $region12: #{positional_encoding_forward.1} parent=0 // pred_region
    _
  $region13: #{positional_encoding_forward.1} parent=0 // pred_fallthru
    _
  // Predicated region
  $region14: #{positional_encoding_forward.1} parent=0 // pred_check
    _
  $region15: #{positional_encoding_forward.1} parent=0 // pred_check_branch
    %21 = sbr.rel (0) target = $region17
  $region16: #{positional_encoding_forward.1} parent=0 // pred_region
    _
  $region17: #{positional_encoding_forward.1} parent=0 // pred_fallthru
    _

</llo_original>
